<compile_context>
chip_gen: v7x
topology: tpu7x:2x2x1
jax: 0.10.0
libtpu: 0.0.40
codegen_flags: <defaults>
</compile_context>

<pallas_src>
import jax
import jax.numpy as jnp
from jax.experimental import pallas as pl
from jax.experimental.pallas import tpu as pltpu


def _pos_enc_kernel(x_ref, pe_ref, o_ref):
    # x_ref : (bt, lt) tile of the flattened (B, S*D) input
    # pe_ref: (1,  lt) matching slice of the flattened PE table
    # o_ref : (bt, lt)
    # The (1, lt) -> (bt, lt) sublane broadcast is a cheap VPU op; jnp type
    # promotion inside the add reproduces PyTorch's `x + pe` promotion rules.
    o_ref[...] = (x_ref[...] + pe_ref[...]).astype(o_ref.dtype)


def _pick_lane_tile(sd, lane_cap):
    """Largest lane tile <= lane_cap that is a multiple of 128 and divides sd,
    or the full extent if it already fits under the cap."""
    if sd <= lane_cap:
        return sd
    cap = max(128, (lane_cap // 128) * 128)
    for cand in range(cap, 0, -128):
        if sd % cand == 0:
            return cand
    # sd has no multiple-of-128 divisor <= cap (sd itself not a multiple of
    # 128); fall back to the cap — Pallas masks the single ragged edge tile.
    return cap


def trainable_position_encoding(x, pe_weight, *,
                                target_block_bytes=4 << 20,   # ~4 MiB blocks
                                max_lane_tile=65536,          # 512 * 128 lanes
                                donate_x=False):
    """x: (B, S, D), pe_weight: (S, D) -> (B, S, D) = x + pe_weight[None]."""
    B, S, D = x.shape
    assert pe_weight.shape == (S, D)
    SD = S * D

    # PyTorch-style type promotion for the add (e.g. bf16 + f32 -> f32).
    out_dtype = jnp.result_type(x.dtype, pe_weight.dtype)

    # Flatten to lane-dense 2D views (free reshapes on contiguous layouts).
    x2 = x.reshape(B, SD)
    pe2 = pe_weight.reshape(1, SD)

    x_isz = jnp.dtype(x.dtype).itemsize
    pe_isz = jnp.dtype(pe_weight.dtype).itemsize
    o_isz = jnp.dtype(out_dtype).itemsize
    big_isz = max(x_isz, o_isz)

    # Sublane packing multiple from the narrowest dtype touched:
    # f32 -> 8, bf16 -> 16, int8/fp8 -> 32.
    min_isz = max(1, min(x_isz, pe_isz, o_isz))
    sublane_mult = max(8, 32 // min_isz)

    # --- lane tile: full extent if it fits; otherwise a multiple of 128 that
    # divides SD.  Cap so that even a minimum-height (sublane_mult) block
    # stays within the target block size.
    row_budget = max(128, (target_block_bytes // (sublane_mult * big_isz)) // 128 * 128)
    lane_cap = min(max_lane_tile, row_budget)
    lane_tile = _pick_lane_tile(SD, lane_cap)

    # --- batch tile: fill up toward target_block_bytes.  Always either a
    # multiple of sublane_mult or the full batch extent (both legal shapes).
    rows = target_block_bytes // max(1, lane_tile * big_isz)
    if rows >= B:
        batch_tile = B
    else:
        batch_tile = max(sublane_mult, (rows // sublane_mult) * sublane_mult)
        batch_tile = min(batch_tile, B)

    n_lane_tiles = pl.cdiv(SD, lane_tile)
    n_batch_tiles = pl.cdiv(B, batch_tile)

    # v7x has 2 TensorCores: if the adaptive tiling collapsed everything into a
    # single large block, split the batch so a (1,1) grid doesn't idle one core
    # (harmless extra ~0.35us step on 1-TC chips since the block is >= 2 MiB).
    if (n_lane_tiles == 1 and n_batch_tiles == 1
            and B >= 2 * sublane_mult
            and batch_tile * lane_tile * big_isz >= (2 << 20)):
        half = -(-B // 2)
        batch_tile = min(B, ((half + sublane_mult - 1) // sublane_mult) * sublane_mult)
        n_batch_tiles = pl.cdiv(B, batch_tile)

    # VMEM budget: double-buffered x + double-buffered out + single-buffered
    # PE slice (Buffered(1)) + headroom.  Safe on v5e/v6e/v7x scoped limits.
    block_elems = batch_tile * lane_tile
    vmem_needed = 2 * block_elems * x_isz + 2 * block_elems * o_isz + lane_tile * pe_isz
    vmem_limit = int(min(max(vmem_needed + (2 << 20), 16 << 20), 40 << 20))

    cost = pl.CostEstimate(
        flops=B * SD,                                            # one add / element
        transcendentals=0,
        bytes_accessed=B * SD * x_isz + B * SD * o_isz + SD * pe_isz,
    )

    # PE slice changes only with the outer lane-tile axis -> single buffer is
    # enough; don't burn VMEM double-buffering it.
    pe_spec_kwargs = {}
    if hasattr(pl, "Buffered"):
        pe_spec_kwargs["pipeline_mode"] = pl.Buffered(1)
    pe_spec = pl.BlockSpec((1, lane_tile), lambda t, b: (0, t), **pe_spec_kwargs)

    # Alias flattened x -> out only when the caller donates x and dtypes match.
    aliases = {0: 0} if (donate_x and x.dtype == out_dtype) else {}

    out2 = pl.pallas_call(
        _pos_enc_kernel,
        out_shape=jax.ShapeDtypeStruct((B, SD), out_dtype),
        grid_spec=pl.GridSpec(
            # Batch is the innermost grid axis so the PE block index (which
            # depends only on the lane-tile index) is constant across
            # consecutive steps -> PE tile is not re-DMA'd per batch step.
            grid=(n_lane_tiles, n_batch_tiles),
            in_specs=[
                pl.BlockSpec((batch_tile, lane_tile), lambda t, b: (b, t)),  # x
                pe_spec,                                                     # pe
            ],
            out_specs=pl.BlockSpec((batch_tile, lane_tile), lambda t, b: (b, t)),
        ),
        compiler_params=pltpu.CompilerParams(
            dimension_semantics=("parallel", "parallel"),
            vmem_limit_bytes=vmem_limit,
        ),
        cost_estimate=cost,
        input_output_aliases=aliases,
    )(x2, pe2)

    return out2.reshape(B, S, D)


if __name__ == "__main__":
    # ---- Test 1: module's nominal shapes (max_sequence_length=8, d_embed=32, B=2).
    B, S, D = 2, 8, 32
    key = jax.random.PRNGKey(0)
    x = jax.random.normal(key, (B, S, D), dtype=jnp.float32)

    # Module __init__: nn.init.constant(pe.weight, 0.0) -> all-zeros table.
    pe_weight = jnp.zeros((S, D), dtype=jnp.float32)
    out = jax.block_until_ready(trainable_position_encoding(x, pe_weight))
    assert out.shape == (B, S, D)
    assert jnp.allclose(out, x + pe_weight[None, :, :], atol=1e-6, rtol=1e-6)

    # Non-trivial (deterministic) table so the add path does real work.
    pe_nz = jax.random.normal(jax.random.PRNGKey(1), (S, D), dtype=jnp.float32)
    out_nz = jax.block_until_ready(trainable_position_encoding(x, pe_nz))
    assert jnp.allclose(out_nz, x + pe_nz[None, :, :], atol=1e-6, rtol=1e-6)

    # ---- Test 2: larger shape with a small target to exercise the multi lane-tile
    # grid path (divisor lane tiles, PE residency across inner batch steps).
    B2, S2, D2 = 16, 64, 64   # SD = 4096 = 32 * 128
    x_big = jax.random.normal(jax.random.PRNGKey(2), (B2, S2, D2), dtype=jnp.float32)
    pe_big = jax.random.normal(jax.random.PRNGKey(3), (S2, D2), dtype=jnp.float32)
    out_big = jax.block_until_ready(
        trainable_position_encoding(x_big, pe_big,
                                    target_block_bytes=64 * 1024,
                                    max_lane_tile=1024)
    )
    assert jnp.allclose(out_big, x_big + pe_big[None, :, :], atol=1e-6, rtol=1e-6)

    # ---- Test 3: mixed precision follows PyTorch promotion (bf16 x + f32 pe -> f32).
    x_bf16 = x.astype(jnp.bfloat16)
    out_mix = jax.block_until_ready(trainable_position_encoding(x_bf16, pe_nz))
    assert out_mix.dtype == jnp.float32
    assert jnp.allclose(out_mix, x_bf16.astype(jnp.float32) + pe_nz[None, :, :],
                        atol=1e-6, rtol=1e-6)

    print("KERNEL_OK")
</pallas_src>

<mosaic_0001>
module attributes {stable_mosaic.version = 11 : i64} {
  func.func @_pos_enc_kernel(%arg0: i32, %arg1: i32, %arg2: memref<2x256xf32, #tpu.memory_space<vmem>>, %arg3: memref<1x256xf32, #tpu.memory_space<vmem>>, %arg4: memref<2x256xf32, #tpu.memory_space<vmem>>) attributes {dimension_semantics = [#tpu.dimension_semantics<parallel>, #tpu.dimension_semantics<parallel>], iteration_bounds = array<i64: 1, 1>, scalar_prefetch = 0 : i64, scratch_operands = 0 : i64, tpu.core_type = #tpu.core_type<tc>, window_params = [{transform_indices = @transform_0, window_bounds = array<i64: 2, 256>}, {pipeline_mode = #tpu.pipeline_mode<synchronous>, transform_indices = @transform_1, window_bounds = array<i64: 1, 256>}, {transform_indices = @transform_2, window_bounds = array<i64: 2, 256>}]} {
    %c0 = arith.constant 0 : index
    %c0_0 = arith.constant 0 : index
    %0 = vector.load %arg2[%c0, %c0_0] : memref<2x256xf32, #tpu.memory_space<vmem>>, vector<2x256xf32>
    %c0_1 = arith.constant 0 : index
    %c0_2 = arith.constant 0 : index
    %1 = vector.load %arg3[%c0_1, %c0_2] : memref<1x256xf32, #tpu.memory_space<vmem>>, vector<1x256xf32>
    %2 = vector.broadcast %1 : vector<1x256xf32> to vector<2x256xf32>
    %3 = arith.addf %0, %2 : vector<2x256xf32>
    %c0_3 = arith.constant 0 : index
    %c0_4 = arith.constant 0 : index
    %4 = vector.load %arg4[%c0_3, %c0_4] : memref<2x256xf32, #tpu.memory_space<vmem>>, vector<2x256xf32>
    tpu.vector_store %arg4[%c0_3, %c0_4], %3 {strides = array<i32>} : memref<2x256xf32, #tpu.memory_space<vmem>>, vector<2x256xf32>,
    return
  }
  func.func @transform_0(%arg0: i32, %arg1: i32) -> (i32, i32) {
    %c0_i32 = arith.constant 0 : i32
    return %arg1, %arg0 : i32, i32
  }
  func.func @transform_1(%arg0: i32, %arg1: i32) -> (i32, i32) {
    %c0_i32 = arith.constant 0 : i32
    %c0_i32_0 = arith.constant 0 : i32
    return %c0_i32, %arg0 : i32, i32
  }
  func.func @transform_2(%arg0: i32, %arg1: i32) -> (i32, i32) {
    %c0_i32 = arith.constant 0 : i32
    return %arg1, %arg0 : i32, i32
  }
}

</mosaic_0001>

<llo_original>
// kernel: tpu_custom_call.1
$region0: #{tpu_custom_call.1}
  #allocation0 [shape = 'u32[]', space=smem, size = 0x4, offset = 0x4, fixed_abs, tag = 'smem constant byte address 0x4 - core index']
  #allocation1 [shape = 'u32[144,128]{1,0:T(1,128)}', space=vmem, size = 0x12000, scoped, tag = 'internal scratch']
  %s0 = inlined_call_operand.hbm [shape: f32[2,256], index: 0, kind: input, shape index: {}]
  %s1 = inlined_call_operand.vmem [shape: f32[1,256], index: 1, kind: input, shape index: {}]
  %s2 = inlined_call_operand.hbm [shape: f32[2,256], index: 2, kind: output, shape index: {}]
  %s3 = sld [smem:[#allocation0]]
  $region22: #{tpu_custom_call.1} parent=0
    _
  %s5 = ssub.s32 1, %s3
  %s6 = scalar_select 0, %s5, %s3
  $region1: #{tpu_custom_call.1} parent=0
    #allocation2 [shape = 'u8[2048]{0}', space=vmem, size = 0x800, scoped, tag = 'input window, operand 0, single buffered']
    #allocation3 [shape = 's32[1]{0}', space=sflag, size = 0x4, scoped, tag = 'scoped memory for tpu_custom_call.1']
    #allocation4 [shape = 's32[1]{0}', space=sflag, size = 0x4, scoped, tag = 'scoped memory for tpu_custom_call.1']
    #allocation5 [shape = 'u8[2048]{0}', space=vmem, size = 0x800, scoped, tag = 'output window, operand 0, single buffered']
    %7 = vsyncpa [#allocation3], 0
    %8 = vsyncpa [#allocation4], 0
    // Predicated region
    $region2: #{tpu_custom_call.1} parent=1 // pred_check
      _
    $region3: #{tpu_custom_call.1} parent=1 // pred_check_branch
      %10 = sbr.rel (0) target = $region5
    $region4: #{tpu_custom_call.1} parent=1 // pred_region
      %s12 = ssub.s32 64, 64
      %13 = vsyncadd [#allocation3], %s12
      %s15 = sshll.u32 [#allocation2], 4
      %s16 = int_to_ptr.vmem [resolvable:$true] %s15
      %18 = dma.hbm_to_vmem [thread:$0]  %s0, 64, %s16, [#allocation3]
    $region5: #{tpu_custom_call.1} parent=1 // pred_fallthru
      _
    // Predicated region
    $region6: #{tpu_custom_call.1} parent=1 // pred_check
      _
    $region7: #{tpu_custom_call.1} parent=1 // pred_check_branch
      %20 = sbr.rel (0) target = $region9
    $region8: #{tpu_custom_call.1} parent=1 // pred_region
      _
    $region9: #{tpu_custom_call.1} parent=1 // pred_fallthru
      _
    // Predicated region
    $region10: #{tpu_custom_call.1} parent=1 // pred_check
      _
    $region11: #{tpu_custom_call.1} parent=1 // pred_check_branch
      %22 = sbr.rel (0) target = $region13
    $region12: #{tpu_custom_call.1} parent=1 // pred_region
      %23 = dma.done [#allocation3], 64
    $region13: #{tpu_custom_call.1} parent=1 // pred_fallthru
      _
    %v24 = vld [vmem:[#allocation2] sm:$0xf]
    %v25 = vld [vmem:[%s1] sm:$0x3]
    %v27 = vlaneseq
    %v28 = vshrl.u32 %v27, 7
    %v29 = vsub.s32 0, %v28
    %v30 = vrot.slane %v25, %v29
    %v31 = vlaneseq
    %v32 = vshrl.u32 %v31, 7
    %v33 = vsub.s32 1, %v32
    %v34 = vrot.slane %v25, %v33
    %v35 = vcombine.low %v30, %v34
    %v37 = vunpack.c.l.s4 1983009808
    %v38 = vunpack.c.0.s8 %v37
    %v39 = vlaneseq
    %v40 = vshrl.u32 %v39, 7
    %v41 = vsub.s32 %v38, %v40
    %v42 = vrot.slane %v35, %v41
    %v44 = vadd.f32 %v24, %v42
    %45 = vst [vmem:[#allocation5] sm:$0xf] %v44
    // Predicated region
    $region14: #{tpu_custom_call.1} parent=1 // pred_check
      _
    $region15: #{tpu_custom_call.1} parent=1 // pred_check_branch
      %47 = sbr.rel (0) target = $region17
    $region16: #{tpu_custom_call.1} parent=1 // pred_region
      %s49 = ssub.s32 64, 64
      %50 = vsyncadd [#allocation4], %s49
      %s52 = sshll.u32 [#allocation5], 4
      %s53 = int_to_ptr.vmem [resolvable:$true] %s52
      %55 = dma.vmem_to_hbm [thread:$0]  %s53, 64, %s2, [#allocation4]
    $region17: #{tpu_custom_call.1} parent=1 // pred_fallthru
      _
    // Predicated region
    $region18: #{tpu_custom_call.1} parent=1 // pred_check
      _
    $region19: #{tpu_custom_call.1} parent=1 // pred_check_branch
      %57 = sbr.rel (0) target = $region21
    $region20: #{tpu_custom_call.1} parent=1 // pred_region
      %58 = dma.done [#allocation4], 64
    $region21: #{tpu_custom_call.1} parent=1 // pred_fallthru
      _
    %59 = vsyncpa [#allocation3], 1
    %60 = vsyncpa [#allocation4], 1

</llo_original>
